<compile_context>
chip_gen: v5e
topology: v5e:2x2
jax: 0.10.0
libtpu: 0.0.40
codegen_flags: <defaults>
</compile_context>

<pallas_src>
import jax
import jax.numpy as jnp
from jax.experimental import pallas as pl
from jax.experimental.pallas import tpu as pltpu


# ----------------------------------------------------------------------------
# Kernel bodies
# ----------------------------------------------------------------------------
def mlp_layer3_kernel(x_ref, w_ref, o_ref):
    # Whole tiles resident in VMEM; one MXU matmul (f32 acc) + EUP tanh.
    y = jnp.dot(x_ref[...], w_ref[...], preferred_element_type=jnp.float32)
    o_ref[...] = jnp.tanh(y).astype(o_ref.dtype)


def _make_batched_kernel(compute_dtype):
    def kernel(x_ref, w_ref, o_ref):
        # Cast operands to the MXU-native dtype (bf16 on v5e/v6e/v7x) at the
        # dot; accumulate and apply tanh in f32, then cast to the output dtype.
        xv = x_ref[...].astype(compute_dtype)
        wv = w_ref[...].astype(compute_dtype)
        y = jnp.dot(xv, wv, preferred_element_type=jnp.float32)
        o_ref[...] = jnp.tanh(y).astype(o_ref.dtype)
    return kernel


# ----------------------------------------------------------------------------
# Wrappers
# ----------------------------------------------------------------------------
def mlp_layer3(x, x1):
    """Single-call path: grid-less, whole arrays in VMEM (overhead-bound)."""
    M, K = x.shape
    K2, N = x1.shape
    assert K == K2, "inner dims must match"
    out_dtype = jnp.result_type(x.dtype, x1.dtype)
    bytes_accessed = (x.size * x.dtype.itemsize
                      + x1.size * x1.dtype.itemsize
                      + M * N * jnp.dtype(out_dtype).itemsize)
    return pl.pallas_call(
        mlp_layer3_kernel,
        out_shape=jax.ShapeDtypeStruct((M, N), out_dtype),
        in_specs=[
            pl.BlockSpec(memory_space=pltpu.MemorySpace.VMEM),
            pl.BlockSpec(memory_space=pltpu.MemorySpace.VMEM),
        ],
        out_specs=pl.BlockSpec(memory_space=pltpu.MemorySpace.VMEM),
        cost_estimate=pl.CostEstimate(
            flops=2 * M * K * N,
            bytes_accessed=bytes_accessed,
            transcendentals=M * N,
        ),
    )(x, x1)


def pad_weight_lane_dense(x1, lane=128):
    """One-time pad of the (K, N) weight to a lane-dense N (multiple of 128).

    In a real training/inference loop this should be done once outside the hot
    path and the padded weight cached/reused; tanh(0) = 0 in the padded lanes
    so slicing the output back to N is exact.
    """
    K, N = x1.shape
    n_pad = (-N) % lane
    if n_pad == 0:
        return x1
    return jnp.pad(x1, ((0, 0), (0, n_pad)))


def mlp_layer3_batched(x, x1, *, block_m=512, use_bf16=True):
    """Batched path: grid over stacked rows, weight resident in VMEM.

    x  : (B*M, K) stacked inputs from repeated invocations.
    x1 : (K, N) weight (unpadded) or (K, Np) already lane-dense padded weight.
    """
    M, K = x.shape
    K2, N_or_pad = x1.shape
    assert K == K2, "inner dims must match"
    out_dtype = jnp.result_type(x.dtype, x1.dtype)

    # Lane-dense weight / output (amortized one-time pad; see helper).
    w = pad_weight_lane_dense(x1)
    Np = w.shape[1]
    N = N_or_pad  # logical output width to slice back to

    # Row tile: multiple of 8 sublanes; tiny vs VMEM so double-buffering lives.
    block_m = max(8, min(block_m, ((M + 7) // 8) * 8))
    assert block_m % 8 == 0
    grid_m = pl.cdiv(M, block_m)
    m_pad = grid_m * block_m
    xp = x if m_pad == M else jnp.pad(x, ((0, m_pad - M), (0, 0)))

    compute_dtype = jnp.bfloat16 if use_bf16 else xp.dtype
    kernel = _make_batched_kernel(compute_dtype)

    out_padded = pl.pallas_call(
        kernel,
        out_shape=jax.ShapeDtypeStruct((m_pad, Np), out_dtype),
        grid=(grid_m,),
        in_specs=[
            # x: one (block_m, K) row tile per grid step.
            pl.BlockSpec((block_m, K), lambda i: (i, 0)),
            # weight: same block every step -> DMA'd once, stays VMEM-resident.
            pl.BlockSpec((K, Np), lambda i: (0, 0)),
        ],
        out_specs=pl.BlockSpec((block_m, Np), lambda i: (i, 0)),
        compiler_params=pltpu.CompilerParams(
            # "parallel" shards row tiles across the 2 TCs on v7x; no-op on
            # v5e/v6e (1 TC) and costs nothing there.
            dimension_semantics=("parallel",),
            # Explicit scoped-VMEM budget valid on all generations (v7x has
            # only 64 MiB physical VMEM); our tiles are << this, so the
            # pipeline stays double-buffered everywhere.
            vmem_limit_bytes=32 * 1024 * 1024,
        ),
        cost_estimate=pl.CostEstimate(
            flops=2 * m_pad * K * Np,
            bytes_accessed=(xp.size * xp.dtype.itemsize
                            + w.size * w.dtype.itemsize
                            + m_pad * Np * jnp.dtype(out_dtype).itemsize),
            transcendentals=m_pad * Np,
        ),
    )(xp, w)
    return out_padded[:M, :N]


if __name__ == "__main__":
    key = jax.random.PRNGKey(0)
    kx, kw, kb = jax.random.split(key, 3)

    # Shapes from the module's annotate_arguments: x [32, 50], x1 [50, 10]
    x = jax.random.normal(kx, (32, 50), dtype=jnp.float32)
    x1 = jax.random.normal(kw, (50, 10), dtype=jnp.float32)

    # --- Single-call (overhead-bound) path ---
    out = mlp_layer3(x, x1)
    jax.block_until_ready(out)
    ref = jnp.tanh(jnp.matmul(x, x1))
    assert out.shape == (32, 10)
    assert jnp.allclose(out, ref, atol=1e-5, rtol=1e-5)

    # --- Batched path: 32 stacked invocations -> (1024, 50), grid over rows ---
    xb = jax.random.normal(kb, (1024, 50), dtype=jnp.float32)
    refb = jnp.tanh(jnp.matmul(xb, x1))

    outb_f32 = mlp_layer3_batched(xb, x1, block_m=256, use_bf16=False)
    jax.block_until_ready(outb_f32)
    assert outb_f32.shape == (1024, 10)
    assert jnp.allclose(outb_f32, refb, atol=1e-5, rtol=1e-5)

    outb_bf16 = mlp_layer3_batched(xb, x1, block_m=256, use_bf16=True)
    jax.block_until_ready(outb_bf16)
    assert outb_bf16.shape == (1024, 10)
    # bf16 MXU operands with f32 accumulation: ~1e-2 level error vs pure f32.
    assert jnp.allclose(outb_bf16, refb, atol=5e-2, rtol=5e-2)

    print("KERNEL_OK")
</pallas_src>

<mosaic_0001>
module attributes {stable_mosaic.version = 11 : i64} {
  func.func @mlp_layer3_kernel(%arg0: memref<32x50xf32, #tpu.memory_space<vmem>>, %arg1: memref<50x10xf32, #tpu.memory_space<vmem>>, %arg2: memref<32x10xf32, #tpu.memory_space<vmem>>) attributes {dimension_semantics = [], scalar_prefetch = 0 : i64, scratch_operands = 0 : i64, tpu.core_type = #tpu.core_type<tc>} {
    %c0 = arith.constant 0 : index
    %c0_0 = arith.constant 0 : index
    %0 = vector.load %arg0[%c0, %c0_0] : memref<32x50xf32, #tpu.memory_space<vmem>>, vector<32x50xf32>
    %c0_1 = arith.constant 0 : index
    %c0_2 = arith.constant 0 : index
    %1 = vector.load %arg1[%c0_1, %c0_2] : memref<50x10xf32, #tpu.memory_space<vmem>>, vector<50x10xf32>
    %cst = arith.constant dense<0.000000e+00> : vector<32x10xf32>
    %2 = tpu.matmul %0, %1, %cst {dimension_numbers = #tpu.dot_dimension_numbers<[1], [0], [0], [1], [0, 0, 1, 1], [], []>} : vector<32x50xf32>, vector<50x10xf32>, vector<32x10xf32> -> vector<32x10xf32>
    %3 = math.tanh %2 : vector<32x10xf32>
    %c0_3 = arith.constant 0 : index
    %c0_4 = arith.constant 0 : index
    %4 = vector.load %arg2[%c0_3, %c0_4] : memref<32x10xf32, #tpu.memory_space<vmem>>, vector<32x10xf32>
    tpu.vector_store %arg2[%c0_3, %c0_4], %3 {strides = array<i32>} : memref<32x10xf32, #tpu.memory_space<vmem>>, vector<32x10xf32>,
    return
  }
}

</mosaic_0001>

<llo_original>
// kernel: tpu_custom_call.1
$region0: #{tpu_custom_call.1}
  #allocation0 [shape = 'u32[]', space=smem, size = 0x4, offset = 0x4, fixed_abs, tag = 'smem constant byte address 0x4 - core index']
  #allocation1 [shape = 'u32[72,128]{1,0:T(1,128)}', space=vmem, size = 0x9000, scoped, tag = 'internal scratch']
  %s0 = inlined_call_operand.vmem [shape: f32[32,50], index: 0, kind: input, shape index: {}]
  %s1 = inlined_call_operand.vmem [shape: f32[50,10], index: 1, kind: input, shape index: {}]
  %s2 = inlined_call_operand.vmem [shape: f32[32,10], index: 2, kind: output, shape index: {}]
  %s3 = sld [smem:[#allocation0]]
  $region18: #{tpu_custom_call.1} parent=0
    _
  %s5 = ssub.s32 1, %s3
  %s6 = scalar_select 0, %s5, %s3
  // Predicated region
  $region2: #{tpu_custom_call.1} parent=0 // pred_check
    _
  $region3: #{tpu_custom_call.1} parent=0 // pred_check_branch
    %8 = sbr.rel (0) target = $region5
  $region4: #{tpu_custom_call.1} parent=0 // pred_region
    _
  $region5: #{tpu_custom_call.1} parent=0 // pred_fallthru
    _
  // Predicated region
  $region6: #{tpu_custom_call.1} parent=0 // pred_check
    _
  $region7: #{tpu_custom_call.1} parent=0 // pred_check_branch
    %10 = sbr.rel (0) target = $region9
  $region8: #{tpu_custom_call.1} parent=0 // pred_region
    _
  $region9: #{tpu_custom_call.1} parent=0 // pred_fallthru
    _
  %v11 = vld [vmem:[%s0] sm:$0xff]
  %v12 = vld [vmem:[%s0 + $0x8] sm:$0xff]
  %v13 = vld [vmem:[%s0 + $0x10] sm:$0xff]
  %v14 = vld [vmem:[%s0 + $0x18] sm:$0xff]
  %v15 = vld [vmem:[%s1] sm:$0xff]
  %v16 = vld [vmem:[%s1 + $0x8] sm:$0xff]
  %v17 = vld [vmem:[%s1 + $0x10] sm:$0xff]
  %v18 = vld [vmem:[%s1 + $0x18] sm:$0xff]
  %v19 = vld [vmem:[%s1 + $0x20] sm:$0xff]
  %v20 = vld [vmem:[%s1 + $0x28] sm:$0xff]
  %v21 = vld [vmem:[%s1 + $0x30] sm:$0x3]
  %vm22 = vcmask 408576
  %v24 = vsel %vm22, %v11, 0
  %v27 = vsel %vm22, %v12, 0
  %v30 = vsel %vm22, %v13, 0
  %v33 = vsel %vm22, %v14, 0
  %vm35 = vcmask 1041408
  %v37 = vsel %vm35, %v21, 0
  %39 = vmatpush.msra.mxu0 0.0
  %40 = vmatpush.msra.mxu0 0.0
  %41 = vmatpush.msra.mxu0 0.0
  %42 = vmatpush.msra.mxu0 0.0
  %43 = vmatpush.msra.mxu0 0.0
  %44 = vmatpush.msra.mxu0 0.0
  %45 = vmatpush.msra.mxu0 0.0
  %46 = vmatpush.msra.mxu0 0.0
  %47 = vmatpush.msra.mxu0 0.0
  %48 = vmatpush.msra.mxu0 %v37
  %49 = vmatpush.msra.mxu0 %v20
  %50 = vmatpush.msra.mxu0 %v19
  %51 = vmatpush.msra.mxu0 %v18
  %52 = vmatpush.msra.mxu0 %v17
  %53 = vmatpush.msra.mxu0 %v16
  %54 = vmatpush.msra.mxu0 %v15
  %55 = vmatmul.f32.gmra.mxu0 %v24
  %v56 = vpop.f32.mrf.mxu0
  %v57 = vadd.f32 0.0, %v56
  %58 = vmatmul.f32.gmra.mxu0 %v27
  %v59 = vpop.f32.mrf.mxu0
  %v60 = vadd.f32 0.0, %v59
  %61 = vmatmul.f32.gmra.mxu0 %v30
  %v62 = vpop.f32.mrf.mxu0
  %v63 = vadd.f32 0.0, %v62
  %64 = vmatmul.f32.gmra.mxu0 %v33
  %v65 = vpop.f32.mrf.mxu0
  %v66 = vadd.f32 0.0, %v65
  %67 = vdwg.mxu0
  %v68 = vtanh.pop %v57
  %v69 = vtanh.pop %v60
  %v70 = vtanh.pop %v63
  %v71 = vtanh.pop %v66
  %vm72 = vcmask 80896
  %73 = vst.msk [vmem:[%s2] sm:$0xff] %vm72, %v68
  %74 = vst.msk [vmem:[%s2 + $0x8] sm:$0xff] %vm72, %v69
  %75 = vst.msk [vmem:[%s2 + $0x10] sm:$0xff] %vm72, %v70
  %76 = vst.msk [vmem:[%s2 + $0x18] sm:$0xff] %vm72, %v71
  // Predicated region
  $region10: #{tpu_custom_call.1} parent=0 // pred_check
    _
  $region11: #{tpu_custom_call.1} parent=0 // pred_check_branch
    %78 = sbr.rel (0) target = $region13
  $region12: #{tpu_custom_call.1} parent=0 // pred_region
    _
  $region13: #{tpu_custom_call.1} parent=0 // pred_fallthru
    _
  // Predicated region
  $region14: #{tpu_custom_call.1} parent=0 // pred_check
    _
  $region15: #{tpu_custom_call.1} parent=0 // pred_check_branch
    %80 = sbr.rel (0) target = $region17
  $region16: #{tpu_custom_call.1} parent=0 // pred_region
    _
  $region17: #{tpu_custom_call.1} parent=0 // pred_fallthru
    _

</llo_original>
